<compile_context>
chip_gen: v7x
topology: tpu7x:2x2x1
jax: 0.10.0
libtpu: 0.0.40
codegen_flags: <defaults>
</compile_context>

<pallas_src>
import jax
import jax.numpy as jnp
from jax.experimental import pallas as pl
from jax.experimental.pallas import tpu as pltpu


def _tpu_generation():
    try:
        kind = jax.devices()[0].device_kind.lower()
    except Exception:
        return 6
    if "v7" in kind or "tpu7" in kind or "7x" in kind:
        return 7
    if "v5" in kind:
        return 5
    return 6


def _make_mlp_kernel(chunk, n_chunks):
    sub = chunk // 128  # output rows (sublanes) produced per chunk

    def mlp_kernel(x_ref, w_ref, b_ref, o_ref):
        # x_ref: (TB, D) VMEM   w_ref: (1, D) VMEM   b_ref: (1,) SMEM
        # o_ref: (TB//128, 128) VMEM (lane-dense output block)
        w = w_ref[...]                      # (1, D) broadcasts over rows
        bias = b_ref[0]                     # scalar bias from SMEM

        def body(c, carry):
            r0 = pl.multiple_of(c * chunk, chunk)
            x = x_ref[pl.ds(r0, chunk), :].astype(jnp.float32)   # (chunk, D)
            z = jnp.sum(x * w, axis=-1) + bias                   # VPU FMA + XLU reduce
            y = jax.nn.sigmoid(z)                                 # EUP
            o0 = pl.multiple_of(c * sub, sub)
            o_ref[pl.ds(o0, sub), :] = y.reshape(sub, 128).astype(o_ref.dtype)
            return carry

        jax.lax.fori_loop(0, n_chunks, body, 0, unroll=True)

    return mlp_kernel


def mlp_forward(x, w, b, *, tb=None):
    """sigmoid(x @ w^T + b).  x: (B, D); w: (1, D)/(D, 1)/(D,); b: scalar-like.

    Returns (B, 1) float32.
    """
    B, D = x.shape
    w_row = jnp.asarray(w, jnp.float32).reshape(1, D)
    b_s = jnp.asarray(b, jnp.float32).reshape(1)

    gen = _tpu_generation()
    if gen == 7:
        # 2 x 8 MiB double-buffered x fits the 32 MiB scoped default; still
        # cap vmem explicitly under the 64 MiB physical limit.
        tb_max, vmem_limit, min_tiles = 16384, 48 * 1024 * 1024, 2
    else:
        # v5e/v6e: 8192-row tiles (~4 MiB of lane-padded x per step) reach
        # ~85-90% of the HBM roofline; raise past the 16/32 MiB scoped default.
        tb_max, vmem_limit, min_tiles = 8192, 64 * 1024 * 1024, 1

    def round_tb(t):
        # tb must be a multiple of 128; multiples of 1024 once > 1024 so the
        # in-kernel 1024-row chunking divides evenly.
        if t <= 1024:
            return max(128, pl.cdiv(t, 128) * 128)
        return pl.cdiv(t, 1024) * 1024

    if tb is not None:
        tb = round_tb(int(tb))
    else:
        b128 = max(128, pl.cdiv(B, 128) * 128)
        if b128 <= 1024:
            tb = b128                                   # tiny batch: single small tile
        else:
            # At least `min_tiles` grid steps (feeds both TCs on v7x), at most
            # tb_max rows per step.
            tb = min(tb_max, pl.cdiv(b128, min_tiles * 1024) * 1024)

    chunk = min(1024, tb)
    n_chunks = tb // chunk

    B_pad = pl.cdiv(B, tb) * tb
    if B_pad != B:
        x = jnp.pad(x, ((0, B_pad - B), (0, 0)))        # padded rows sliced off below
    num_tiles = B_pad // tb

    out2d = pl.pallas_call(
        _make_mlp_kernel(chunk, n_chunks),
        out_shape=jax.ShapeDtypeStruct((B_pad // 128, 128), jnp.float32),
        grid=(num_tiles,),
        in_specs=[
            pl.BlockSpec((tb, D), lambda i: (i, 0)),            # X tile (pipelined)
            pl.BlockSpec((1, D), lambda i: (0, 0)),             # weight row (resident)
            pl.BlockSpec(memory_space=pltpu.MemorySpace.SMEM),  # scalar bias
        ],
        out_specs=pl.BlockSpec((tb // 128, 128), lambda i: (i, 0)),
        compiler_params=pltpu.CompilerParams(
            dimension_semantics=("parallel",),
            vmem_limit_bytes=vmem_limit,
        ),
        cost_estimate=pl.CostEstimate(
            flops=2 * B_pad * D,
            transcendentals=B_pad,
            # D=32 sits alone in the lane dim, so the (8,128)-tiled HBM read is
            # padded to 128 lanes; report the real traffic for XLA scheduling.
            bytes_accessed=4 * (B_pad * 128 + B_pad + 128),
        ),
    )(x, w_row, b_s)

    return out2d.reshape(B_pad)[:B].reshape(B, 1)


if __name__ == "__main__":
    key = jax.random.PRNGKey(0)
    k_x, k_w, k_b, k_x2 = jax.random.split(key, 4)

    batch, inputs = 8, 32

    # nn.Linear default init: uniform(-1/sqrt(inputs), 1/sqrt(inputs)).
    bound = 1.0 / (inputs ** 0.5)
    w = jax.random.uniform(k_w, (1, inputs), jnp.float32, -bound, bound)  # (out=1, in)
    b = jax.random.uniform(k_b, (1,), jnp.float32, -bound, bound)

    # Small case (single-tile path, generation-aware defaults).
    x = jax.random.normal(k_x, (batch, inputs), jnp.float32)
    out = jax.block_until_ready(mlp_forward(x, w, b))
    ref = jax.nn.sigmoid(x @ w.T + b)
    assert out.shape == (batch, 1)
    assert jnp.allclose(out, ref, atol=1e-5, rtol=1e-5)

    # Non-multiple batch, forced small tile -> multi-step grid + padding path.
    batch2 = 2088
    x2 = jax.random.normal(k_x2, (batch2, inputs), jnp.float32)
    ref2 = jax.nn.sigmoid(x2 @ w.T + b)
    out2 = jax.block_until_ready(mlp_forward(x2, w, b, tb=1024))
    assert out2.shape == (batch2, 1)
    assert jnp.allclose(out2, ref2, atol=1e-5, rtol=1e-5)

    # Same batch through the default (generation-aware) tiling.
    out3 = jax.block_until_ready(mlp_forward(x2, w, b))
    assert out3.shape == (batch2, 1)
    assert jnp.allclose(out3, ref2, atol=1e-5, rtol=1e-5)

    print("KERNEL_OK")
</pallas_src>

<mosaic_0001>
module attributes {stable_mosaic.version = 11 : i64} {
  func.func @mlp_kernel(%arg0: i32, %arg1: memref<128x32xf32, #tpu.memory_space<vmem>>, %arg2: memref<1x32xf32, #tpu.memory_space<vmem>>, %arg3: memref<1xf32, #tpu.memory_space<smem>>, %arg4: memref<1x128xf32, #tpu.memory_space<vmem>>) attributes {dimension_semantics = [#tpu.dimension_semantics<parallel>], iteration_bounds = array<i64: 1>, scalar_prefetch = 0 : i64, scratch_operands = 0 : i64, tpu.core_type = #tpu.core_type<tc>, window_params = [{transform_indices = @transform_0, window_bounds = array<i64: 128, 32>}, {pipeline_mode = #tpu.pipeline_mode<synchronous>, transform_indices = @transform_1, window_bounds = array<i64: 1, 32>}, {transform_indices = @transform_2, window_bounds = array<i64: 1>}, {transform_indices = @transform_3, window_bounds = array<i64: 1, 128>}]} {
    %c0 = arith.constant 0 : index
    %c0_0 = arith.constant 0 : index
    %0 = vector.load %arg2[%c0, %c0_0] : memref<1x32xf32, #tpu.memory_space<vmem>>, vector<1x32xf32>
    %c0_1 = arith.constant 0 : index
    %1 = memref.load %arg3[%c0_1] : memref<1xf32, #tpu.memory_space<smem>>
    %c0_i32 = arith.constant 0 : i32
    %c128_i32 = arith.constant 128 : i32
    %2 = arith.muli %c0_i32, %c128_i32 : i32
    %3 = tpu.assume_multiple %2, 128 : i32
    %4 = arith.index_cast %3 : i32 to index
    %c0_2 = arith.constant 0 : index
    %5 = vector.load %arg1[%4, %c0_2] : memref<128x32xf32, #tpu.memory_space<vmem>>, vector<128x32xf32>
    %6 = vector.broadcast %0 : vector<1x32xf32> to vector<128x32xf32>
    %7 = arith.mulf %5, %6 : vector<128x32xf32>
    %cst = arith.constant dense<0.000000e+00> : vector<128xf32>
    %8 = vector.multi_reduction <add>, %7, %cst [1] : vector<128x32xf32> to vector<128xf32>
    %9 = vector.broadcast %1 : f32 to vector<128xf32>
    %10 = arith.addf %8, %9 : vector<128xf32>
    %11 = arith.negf %10 : vector<128xf32>
    %12 = math.exp %11 : vector<128xf32>
    %cst_3 = arith.constant 1.000000e+00 : f32
    %13 = vector.broadcast %cst_3 : f32 to vector<128xf32>
    %14 = arith.addf %13, %12 : vector<128xf32>
    %15 = arith.divf %13, %14 : vector<128xf32>
    %c1_i32 = arith.constant 1 : i32
    %16 = arith.muli %c0_i32, %c1_i32 : i32
    %17 = tpu.assume_multiple %16, 1 : i32
    %18 = vector.shape_cast %15 : vector<128xf32> to vector<1x128xf32>
    %19 = arith.index_cast %17 : i32 to index
    %c0_4 = arith.constant 0 : index
    %20 = vector.load %arg4[%19, %c0_4] : memref<1x128xf32, #tpu.memory_space<vmem>>, vector<1x128xf32>
    tpu.vector_store %arg4[%19, %c0_4], %18 {strides = array<i32>} : memref<1x128xf32, #tpu.memory_space<vmem>>, vector<1x128xf32>,
    %c1_i32_5 = arith.constant 1 : i32
    return
  }
  func.func @transform_0(%arg0: i32) -> (i32, i32) {
    %c0_i32 = arith.constant 0 : i32
    %c0_i32_0 = arith.constant 0 : i32
    return %arg0, %c0_i32 : i32, i32
  }
  func.func @transform_1(%arg0: i32) -> (i32, i32) {
    %c0_i32 = arith.constant 0 : i32
    %c0_i32_0 = arith.constant 0 : i32
    %c0_i32_1 = arith.constant 0 : i32
    return %c0_i32, %c0_i32_0 : i32, i32
  }
  func.func @transform_2(%arg0: i32) -> i32 {
    %c0_i32 = arith.constant 0 : i32
    %c0_i32_0 = arith.constant 0 : i32
    return %c0_i32 : i32
  }
  func.func @transform_3(%arg0: i32) -> (i32, i32) {
    %c0_i32 = arith.constant 0 : i32
    %c0_i32_0 = arith.constant 0 : i32
    return %arg0, %c0_i32 : i32, i32
  }
}

</mosaic_0001>

<llo_original>
// kernel: tpu_custom_call.1
$region0: #{tpu_custom_call.1}
  #allocation0 [shape = 'u32[]', space=smem, size = 0x4, offset = 0x4, fixed_abs, tag = 'smem constant byte address 0x4 - core index']
  #allocation1 [shape = 'u32[144,128]{1,0:T(1,128)}', space=vmem, size = 0x12000, scoped, tag = 'internal scratch']
  #allocation2 [shape = 'f32[1]{0:T(128)S(6)}', space=smem, size = 0x200, scoped, tag = 'scoped memory for tpu_custom_call.1']
  %s0 = inlined_call_operand.hbm [shape: f32[128,32], index: 0, kind: input, shape index: {}]
  %s1 = inlined_call_operand.hbm [shape: f32[1,32], index: 1, kind: input, shape index: {}]
  %s2 = inlined_call_operand.<no memory space> [shape: f32[1], index: 2, kind: input, shape index: {}]
  %s3 = inlined_call_operand.hbm [shape: f32[1,128], index: 3, kind: output, shape index: {}]
  %s4 = sld [smem:[#allocation0]]
  $region30: #{tpu_custom_call.1} parent=0
    _
  %s6 = ssub.s32 1, %s4
  %s7 = scalar_select 0, %s6, %s4
  %8 = sst [smem:[#allocation2]] %s2
  $region1: #{tpu_custom_call.1} parent=0
    #allocation3 [shape = 'u8[65536]{0}', space=vmem, size = 0x10000, scoped, tag = 'input window, operand 0, single buffered']
    #allocation4 [shape = 's32[1]{0}', space=sflag, size = 0x4, scoped, tag = 'scoped memory for tpu_custom_call.1']
    #allocation5 [shape = 's32[1]{0}', space=sflag, size = 0x4, scoped, tag = 'scoped memory for tpu_custom_call.1']
    #allocation6 [shape = 'u8[512]{0}', space=vmem, size = 0x400, scoped, tag = 'input window, operand 1, single buffered']
    #allocation7 [shape = 's32[1]{0}', space=sflag, size = 0x4, scoped, tag = 'scoped memory for tpu_custom_call.1']
    #allocation8 [shape = 'u8[512]{0}', space=vmem, size = 0x400, scoped, tag = 'output window, operand 0, single buffered']
    %9 = vsyncpa [#allocation4], 0
    %10 = vsyncpa [#allocation7], 0
    %11 = vsyncpa [#allocation5], 0
    // Predicated region
    $region2: #{tpu_custom_call.1} parent=1 // pred_check
      _
    $region3: #{tpu_custom_call.1} parent=1 // pred_check_branch
      %13 = sbr.rel (0) target = $region5
    $region4: #{tpu_custom_call.1} parent=1 // pred_region
      %s15 = ssub.s32 2048, 2048
      %16 = vsyncadd [#allocation4], %s15
      %s17 = sshll.u32 [#allocation3], 4
      %s18 = int_to_ptr.vmem [resolvable:$true] %s17
      %23 = dma.hbm_to_vmem [thread:$0]  %s0, 2048, %s18, [#allocation4], 128, 128, 8
    $region5: #{tpu_custom_call.1} parent=1 // pred_fallthru
      _
    // Predicated region
    $region6: #{tpu_custom_call.1} parent=1 // pred_check
      _
    $region7: #{tpu_custom_call.1} parent=1 // pred_check_branch
      %25 = sbr.rel (0) target = $region9
    $region8: #{tpu_custom_call.1} parent=1 // pred_region
      %s27 = ssub.s32 16, 16
      %28 = vsyncadd [#allocation7], %s27
      %s30 = sshll.u32 [#allocation6], 4
      %s31 = int_to_ptr.vmem [resolvable:$true] %s30
      %33 = dma.hbm_to_vmem [thread:$0]  %s1, 16, %s31, [#allocation7]
    $region9: #{tpu_custom_call.1} parent=1 // pred_fallthru
      _
    // Predicated region
    $region10: #{tpu_custom_call.1} parent=1 // pred_check
      _
    $region11: #{tpu_custom_call.1} parent=1 // pred_check_branch
      %35 = sbr.rel (0) target = $region13
    $region12: #{tpu_custom_call.1} parent=1 // pred_region
      _
    $region13: #{tpu_custom_call.1} parent=1 // pred_fallthru
      _
    // Predicated region
    $region14: #{tpu_custom_call.1} parent=1 // pred_check
      _
    $region15: #{tpu_custom_call.1} parent=1 // pred_check_branch
      %37 = sbr.rel (0) target = $region17
    $region16: #{tpu_custom_call.1} parent=1 // pred_region
      %38 = dma.done [#allocation4], 2048
    $region17: #{tpu_custom_call.1} parent=1 // pred_fallthru
      _
    // Predicated region
    $region18: #{tpu_custom_call.1} parent=1 // pred_check
      _
    $region19: #{tpu_custom_call.1} parent=1 // pred_check_branch
      %40 = sbr.rel (0) target = $region21
    $region20: #{tpu_custom_call.1} parent=1 // pred_region
      %41 = dma.done [#allocation7], 16
    $region21: #{tpu_custom_call.1} parent=1 // pred_fallthru
      _
    %v42 = vld [vmem:[#allocation6] sm:$0x1]
    %s43 = sld [smem:[#allocation2]]
    %v44 = vld [vmem:[#allocation3] sm:$0xff]
    %v45 = vld [vmem:[#allocation3 + $0x8] sm:$0xff]
    %v46 = vld [vmem:[#allocation3 + $0x10] sm:$0xff]
    %v47 = vld [vmem:[#allocation3 + $0x18] sm:$0xff]
    %v48 = vld [vmem:[#allocation3 + $0x20] sm:$0xff]
    %v49 = vld [vmem:[#allocation3 + $0x28] sm:$0xff]
    %v50 = vld [vmem:[#allocation3 + $0x30] sm:$0xff]
    %v51 = vld [vmem:[#allocation3 + $0x38] sm:$0xff]
    %v52 = vld [vmem:[#allocation3 + $0x40] sm:$0xff]
    %v53 = vld [vmem:[#allocation3 + $0x48] sm:$0xff]
    %v54 = vld [vmem:[#allocation3 + $0x50] sm:$0xff]
    %v55 = vld [vmem:[#allocation3 + $0x58] sm:$0xff]
    %v56 = vld [vmem:[#allocation3 + $0x60] sm:$0xff]
    %v57 = vld [vmem:[#allocation3 + $0x68] sm:$0xff]
    %v58 = vld [vmem:[#allocation3 + $0x70] sm:$0xff]
    %v59 = vld [vmem:[#allocation3 + $0x78] sm:$0xff]
    %v61 = vlaneseq
    %v62 = vshrl.u32 %v61, 7
    %v63 = vsub.s32 0, %v62
    %v64 = vrot.slane %v42, %v63
    %v66 = vmul.f32 %v44, %v64
    %v67 = vmul.f32 %v45, %v64
    %v68 = vmul.f32 %v46, %v64
    %v69 = vmul.f32 %v47, %v64
    %v70 = vmul.f32 %v48, %v64
    %v71 = vmul.f32 %v49, %v64
    %v72 = vmul.f32 %v50, %v64
    %v73 = vmul.f32 %v51, %v64
    %v74 = vmul.f32 %v52, %v64
    %v75 = vmul.f32 %v53, %v64
    %v76 = vmul.f32 %v54, %v64
    %v77 = vmul.f32 %v55, %v64
    %v78 = vmul.f32 %v56, %v64
    %v79 = vmul.f32 %v57, %v64
    %v80 = vmul.f32 %v58, %v64
    %v81 = vmul.f32 %v59, %v64
    %vm82 = vcmask 261120
    %v83 = vsel %vm82, %v66, 0.0
    %84 = vadd.xlane.f32.xlu0 %v83
    %v85 = vpop.xlane.xlu0 %84
    %v86 = vsel %vm82, %v67, 0.0
    %87 = vadd.xlane.f32.xlu0 %v86
    %v88 = vpop.xlane.xlu0 %87
    %v89 = vsel %vm82, %v68, 0.0
    %90 = vadd.xlane.f32.xlu0 %v89
    %v91 = vpop.xlane.xlu0 %90
    %v92 = vsel %vm82, %v69, 0.0
    %93 = vadd.xlane.f32.xlu0 %v92
    %v94 = vpop.xlane.xlu0 %93
    %v95 = vsel %vm82, %v70, 0.0
    %96 = vadd.xlane.f32.xlu0 %v95
    %v97 = vpop.xlane.xlu0 %96
    %v98 = vsel %vm82, %v71, 0.0
    %99 = vadd.xlane.f32.xlu0 %v98
    %v100 = vpop.xlane.xlu0 %99
    %v101 = vsel %vm82, %v72, 0.0
    %102 = vadd.xlane.f32.xlu0 %v101
    %v103 = vpop.xlane.xlu0 %102
    %v104 = vsel %vm82, %v73, 0.0
    %105 = vadd.xlane.f32.xlu0 %v104
    %v106 = vpop.xlane.xlu0 %105
    %v107 = vsel %vm82, %v74, 0.0
    %108 = vadd.xlane.f32.xlu0 %v107
    %v109 = vpop.xlane.xlu0 %108
    %v110 = vsel %vm82, %v75, 0.0
    %111 = vadd.xlane.f32.xlu0 %v110
    %v112 = vpop.xlane.xlu0 %111
    %v113 = vsel %vm82, %v76, 0.0
    %114 = vadd.xlane.f32.xlu0 %v113
    %v115 = vpop.xlane.xlu0 %114
    %v116 = vsel %vm82, %v77, 0.0
    %117 = vadd.xlane.f32.xlu0 %v116
    %v118 = vpop.xlane.xlu0 %117
    %v119 = vsel %vm82, %v78, 0.0
    %120 = vadd.xlane.f32.xlu0 %v119
    %v121 = vpop.xlane.xlu0 %120
    %v122 = vsel %vm82, %v79, 0.0
    %123 = vadd.xlane.f32.xlu0 %v122
    %v124 = vpop.xlane.xlu0 %123
    %v125 = vsel %vm82, %v80, 0.0
    %126 = vadd.xlane.f32.xlu0 %v125
    %v127 = vpop.xlane.xlu0 %126
    %v128 = vsel %vm82, %v81, 0.0
    %129 = vadd.xlane.f32.xlu0 %v128
    %v130 = vpop.xlane.xlu0 %129
    %v131 = vstv %s43
    %v132 = vadd.f32 %v85, %v131
    %v133 = vadd.f32 %v88, %v131
    %v134 = vadd.f32 %v91, %v131
    %v135 = vadd.f32 %v94, %v131
    %v136 = vadd.f32 %v97, %v131
    %v137 = vadd.f32 %v100, %v131
    %v138 = vadd.f32 %v103, %v131
    %v139 = vadd.f32 %v106, %v131
    %v140 = vadd.f32 %v109, %v131
    %v141 = vadd.f32 %v112, %v131
    %v142 = vadd.f32 %v115, %v131
    %v143 = vadd.f32 %v118, %v131
    %v144 = vadd.f32 %v121, %v131
    %v145 = vadd.f32 %v124, %v131
    %v146 = vadd.f32 %v127, %v131
    %v147 = vadd.f32 %v130, %v131
    %v148 = vxor.u32 %v132, 2147483648
    %v149 = vxor.u32 %v133, 2147483648
    %v150 = vxor.u32 %v134, 2147483648
    %v151 = vxor.u32 %v135, 2147483648
    %v152 = vxor.u32 %v136, 2147483648
    %v153 = vxor.u32 %v137, 2147483648
    %v154 = vxor.u32 %v138, 2147483648
    %v155 = vxor.u32 %v139, 2147483648
    %v156 = vxor.u32 %v140, 2147483648
    %v157 = vxor.u32 %v141, 2147483648
    %v158 = vxor.u32 %v142, 2147483648
    %v159 = vxor.u32 %v143, 2147483648
    %v160 = vxor.u32 %v144, 2147483648
    %v161 = vxor.u32 %v145, 2147483648
    %v162 = vxor.u32 %v146, 2147483648
    %v163 = vxor.u32 %v147, 2147483648
    %v164 = vmul.f32 %v148, 1.442695
    %v165 = vpow.pop %v164
    %v166 = vmul.f32 %v149, 1.442695
    %v167 = vpow.pop %v166
    %v168 = vmul.f32 %v150, 1.442695
    %v169 = vpow.pop %v168
    %v170 = vmul.f32 %v151, 1.442695
    %v171 = vpow.pop %v170
    %v172 = vmul.f32 %v152, 1.442695
    %v173 = vpow.pop %v172
    %v174 = vmul.f32 %v153, 1.442695
    %v175 = vpow.pop %v174
    %v176 = vmul.f32 %v154, 1.442695
    %v177 = vpow.pop %v176
    %v178 = vmul.f32 %v155, 1.442695
    %v179 = vpow.pop %v178
    %v180 = vmul.f32 %v156, 1.442695
    %v181 = vpow.pop %v180
    %v182 = vmul.f32 %v157, 1.442695
    %v183 = vpow.pop %v182
    %v184 = vmul.f32 %v158, 1.442695
    %v185 = vpow.pop %v184
    %v186 = vmul.f32 %v159, 1.442695
    %v187 = vpow.pop %v186
    %v188 = vmul.f32 %v160, 1.442695
    %v189 = vpow.pop %v188
    %v190 = vmul.f32 %v161, 1.442695
    %v191 = vpow.pop %v190
    %v192 = vmul.f32 %v162, 1.442695
    %v193 = vpow.pop %v192
    %v194 = vmul.f32 %v163, 1.442695
    %v195 = vpow.pop %v194
    %v196 = vadd.f32 %v165, 1.0
    %v197 = vadd.f32 %v167, 1.0
    %v198 = vadd.f32 %v169, 1.0
    %v199 = vadd.f32 %v171, 1.0
    %v200 = vadd.f32 %v173, 1.0
    %v201 = vadd.f32 %v175, 1.0
    %v202 = vadd.f32 %v177, 1.0
    %v203 = vadd.f32 %v179, 1.0
    %v204 = vadd.f32 %v181, 1.0
    %v205 = vadd.f32 %v183, 1.0
    %v206 = vadd.f32 %v185, 1.0
    %v207 = vadd.f32 %v187, 1.0
    %v208 = vadd.f32 %v189, 1.0
    %v209 = vadd.f32 %v191, 1.0
    %v210 = vadd.f32 %v193, 1.0
    %v211 = vadd.f32 %v195, 1.0
    %v212 = vrcp.pop %v196
    %v213 = vmul.f32 1.0, %v212
    %v214 = vrcp.pop %v197
    %v215 = vmul.f32 1.0, %v214
    %v216 = vrcp.pop %v198
    %v217 = vmul.f32 1.0, %v216
    %v218 = vrcp.pop %v199
    %v219 = vmul.f32 1.0, %v218
    %v220 = vrcp.pop %v200
    %v221 = vmul.f32 1.0, %v220
    %v222 = vrcp.pop %v201
    %v223 = vmul.f32 1.0, %v222
    %v224 = vrcp.pop %v202
    %v225 = vmul.f32 1.0, %v224
    %v226 = vrcp.pop %v203
    %v227 = vmul.f32 1.0, %v226
    %v228 = vrcp.pop %v204
    %v229 = vmul.f32 1.0, %v228
    %v230 = vrcp.pop %v205
    %v231 = vmul.f32 1.0, %v230
    %v232 = vrcp.pop %v206
    %v233 = vmul.f32 1.0, %v232
    %v234 = vrcp.pop %v207
    %v235 = vmul.f32 1.0, %v234
    %v236 = vrcp.pop %v208
    %v237 = vmul.f32 1.0, %v236
    %v238 = vrcp.pop %v209
    %v239 = vmul.f32 1.0, %v238
    %v240 = vrcp.pop %v210
    %v241 = vmul.f32 1.0, %v240
    %v242 = vrcp.pop %v211
    %v243 = vmul.f32 1.0, %v242
    %v260 = vlaneseq
    %v261 = vand.u32 %v260, 127
    %v262 = vlaneseq
    %v263 = vshrl.u32 %v262, 7
    %v264 = vsub.s32 %v261, %v263
    %v265 = vrot.slane %v213, %v264
    %v266 = vadd.s32 %v261, 4294967288
    %v267 = vlaneseq
    %v268 = vshrl.u32 %v267, 7
    %v269 = vsub.s32 %v266, %v268
    %v270 = vrot.slane %v215, %v269
    %vm271 = vcmask 130112
    %v272 = vsel %vm271, %v270, %v265
    %v273 = vadd.s32 %v261, 4294967280
    %v274 = vlaneseq
    %v275 = vshrl.u32 %v274, 7
    %v276 = vsub.s32 %v273, %v275
    %v277 = vrot.slane %v217, %v276
    %vm278 = vcmask 195712
    %v279 = vsel %vm278, %v277, %v272
    %v280 = vadd.s32 %v261, 4294967272
    %v281 = vlaneseq
    %v282 = vshrl.u32 %v281, 7
    %v283 = vsub.s32 %v280, %v282
    %v284 = vrot.slane %v219, %v283
    %vm285 = vcmask 261312
    %v286 = vsel %vm285, %v284, %v279
    %v287 = vadd.s32 %v261, 4294967264
    %v288 = vlaneseq
    %v289 = vshrl.u32 %v288, 7
    %v290 = vsub.s32 %v287, %v289
    %v291 = vrot.slane %v221, %v290
    %vm292 = vcmask 326912
    %v293 = vsel %vm292, %v291, %v286
    %v294 = vadd.s32 %v261, 4294967256
    %v295 = vlaneseq
    %v296 = vshrl.u32 %v295, 7
    %v297 = vsub.s32 %v294, %v296
    %v298 = vrot.slane %v223, %v297
    %vm299 = vcmask 392512
    %v300 = vsel %vm299, %v298, %v293
    %v301 = vadd.s32 %v261, 4294967248
    %v302 = vlaneseq
    %v303 = vshrl.u32 %v302, 7
    %v304 = vsub.s32 %v301, %v303
    %v305 = vrot.slane %v225, %v304
    %vm306 = vcmask 458112
    %v307 = vsel %vm306, %v305, %v300
    %v308 = vadd.s32 %v261, 4294967240
    %v309 = vlaneseq
    %v310 = vshrl.u32 %v309, 7
    %v311 = vsub.s32 %v308, %v310
    %v312 = vrot.slane %v227, %v311
    %vm313 = vcmask 523712
    %v314 = vsel %vm313, %v312, %v307
    %v315 = vadd.s32 %v261, 4294967232
    %v316 = vlaneseq
    %v317 = vshrl.u32 %v316, 7
    %v318 = vsub.s32 %v315, %v317
    %v319 = vrot.slane %v229, %v318
    %vm320 = vcmask 589312
    %v321 = vsel %vm320, %v319, %v314
    %v322 = vadd.s32 %v261, 4294967224
    %v323 = vlaneseq
    %v324 = vshrl.u32 %v323, 7
    %v325 = vsub.s32 %v322, %v324
    %v326 = vrot.slane %v231, %v325
    %vm327 = vcmask 654912
    %v328 = vsel %vm327, %v326, %v321
    %v329 = vadd.s32 %v261, 4294967216
    %v330 = vlaneseq
    %v331 = vshrl.u32 %v330, 7
    %v332 = vsub.s32 %v329, %v331
    %v333 = vrot.slane %v233, %v332
    %vm334 = vcmask 720512
    %v335 = vsel %vm334, %v333, %v328
    %v336 = vadd.s32 %v261, 4294967208
    %v337 = vlaneseq
    %v338 = vshrl.u32 %v337, 7
    %v339 = vsub.s32 %v336, %v338
    %v340 = vrot.slane %v235, %v339
    %vm341 = vcmask 786112
    %v342 = vsel %vm341, %v340, %v335
    %v343 = vadd.s32 %v261, 4294967200
    %v344 = vlaneseq
    %v345 = vshrl.u32 %v344, 7
    %v346 = vsub.s32 %v343, %v345
    %v347 = vrot.slane %v237, %v346
    %vm348 = vcmask 851712
    %v349 = vsel %vm348, %v347, %v342
    %v350 = vadd.s32 %v261, 4294967192
    %v351 = vlaneseq
    %v352 = vshrl.u32 %v351, 7
    %v353 = vsub.s32 %v350, %v352
    %v354 = vrot.slane %v239, %v353
    %vm355 = vcmask 917312
    %v356 = vsel %vm355, %v354, %v349
    %v357 = vadd.s32 %v261, 4294967184
    %v358 = vlaneseq
    %v359 = vshrl.u32 %v358, 7
    %v360 = vsub.s32 %v357, %v359
    %v361 = vrot.slane %v241, %v360
    %vm362 = vcmask 982912
    %v363 = vsel %vm362, %v361, %v356
    %v364 = vadd.s32 %v261, 4294967176
    %v365 = vlaneseq
    %v366 = vshrl.u32 %v365, 7
    %v367 = vsub.s32 %v364, %v366
    %v368 = vrot.slane %v243, %v367
    %vm369 = vcmask 1048512
    %v370 = vsel %vm369, %v368, %v363
    %372 = vst [vmem:[#allocation8] sm:$0x1] %v370
    // Predicated region
    $region22: #{tpu_custom_call.1} parent=1 // pred_check
      _
    $region23: #{tpu_custom_call.1} parent=1 // pred_check_branch
      %374 = sbr.rel (0) target = $region25
    $region24: #{tpu_custom_call.1} parent=1 // pred_region
      %s376 = ssub.s32 16, 16
      %377 = vsyncadd [#allocation5], %s376
      %s379 = sshll.u32 [#allocation8], 4
      %s380 = int_to_ptr.vmem [resolvable:$true] %s379
      %382 = dma.vmem_to_hbm [thread:$0]  %s380, 16, %s3, [#allocation5]
    $region25: #{tpu_custom_call.1} parent=1 // pred_fallthru
      _
    // Predicated region
    $region26: #{tpu_custom_call.1} parent=1 // pred_check
      _
    $region27: #{tpu_custom_call.1} parent=1 // pred_check_branch
      %384 = sbr.rel (0) target = $region29
    $region28: #{tpu_custom_call.1} parent=1 // pred_region
      %385 = dma.done [#allocation5], 16
    $region29: #{tpu_custom_call.1} parent=1 // pred_fallthru
      _
    %386 = vsyncpa [#allocation4], 1
    %387 = vsyncpa [#allocation7], 1
    %388 = vsyncpa [#allocation5], 1

</llo_original>
